<compile_context>
chip_gen: v7x
topology: tpu7x:2x2x1
jax: 0.10.0
libtpu: 0.0.40
codegen_flags: <defaults>
</compile_context>

<pallas_src>
import functools

import jax
import jax.numpy as jnp
from jax.experimental import pallas as pl
from jax.experimental.pallas import tpu as pltpu


def _round_up(x: int, m: int) -> int:
    return (x + m - 1) // m * m


def _intent_kernel(ids_ref, emb_ref, w1_ref, b1_ref, w2_ref, b2_ref,
                   probs_ref, preds_ref, *, num_labels: int, k: int):
    """Encoder + softmax + top-k for one batch tile of TB sentences."""
    ids = ids_ref[...]                                   # (TB, S) int32
    TB, S = ids.shape
    V = emb_ref.shape[0]
    Lp = w2_ref.shape[1]                                 # lane-padded labels
    wdt = emb_ref.dtype                                  # matmul dtype (f32/bf16)

    # ---- embedding lookup + mean pool folded into a token histogram ----
    # hist[b, v] = count(ids[b, :] == v) / S  ;  pooled = hist @ emb
    lane_v = jax.lax.broadcasted_iota(jnp.int32, (TB, V), 1)
    hist = jnp.zeros((TB, V), jnp.float32)
    for s in range(S):                                   # S is small & static
        hist += (lane_v == ids[:, s:s + 1]).astype(jnp.float32)
    hist *= jnp.float32(1.0 / S)
    pooled = jnp.dot(hist.astype(wdt), emb_ref[...],
                     preferred_element_type=jnp.float32)           # (TB, D)

    # ---- MLP head (MXU in weight dtype, elementwise in f32) ----
    h = jnp.dot(pooled.astype(wdt), w1_ref[...],
                preferred_element_type=jnp.float32) + b1_ref[...]
    h = jnp.maximum(h, 0.0)                                         # (TB, H)
    logits = jnp.dot(h.astype(wdt), w2_ref[...],
                     preferred_element_type=jnp.float32) + b2_ref[...]  # (TB, Lp)

    # ---- softmax numerator; normalization deferred to the k winners ----
    lane = jax.lax.broadcasted_iota(jnp.int32, (TB, Lp), 1)
    valid = lane < num_labels
    m = jnp.max(logits, axis=1, keepdims=True)
    e = jnp.exp(logits - m)
    e = jnp.where(valid, e, 0.0)                                    # (TB, Lp)
    denom = jnp.sum(e, axis=1, keepdims=True)                       # (TB, 1)
    inv = pl.reciprocal(denom, approx=False)

    # ---- top-k: one packed-key max per step ----
    # key = (bitcast(e) & ~low_mask) | (Lp-1 - lane).  e >= 0 so int ordering
    # of the high bits matches float ordering; the inverted lane index in the
    # low bits breaks ties toward the lowest index (lax.top_k's stable order).
    nbits = max((Lp - 1).bit_length(), 1)
    low_mask = (1 << nbits) - 1
    hi_mask = jnp.int32(~low_mask)
    idx_code = (Lp - 1) - lane
    work = jnp.where(valid, e, jnp.float32(-1.0))        # masked lanes -> negative keys
    sel_masks = []
    for j in range(k):                                   # k is static
        key = (pltpu.bitcast(work, jnp.int32) & hi_mask) | idx_code
        win = jnp.max(key, axis=1, keepdims=True)        # single XLU reduce per step
        arg = (Lp - 1) - (win & jnp.int32(low_mask))     # (TB, 1) winner index
        sel = lane == arg
        preds_ref[:, j:j + 1] = arg
        sel_masks.append(sel)
        work = jnp.where(sel, jnp.float32(-1.0), work)
    # Exact winner probabilities: independent masked sums (off the serial
    # argmax chain), scaled once by the shared reciprocal of the denominator.
    for j, sel in enumerate(sel_masks):
        val = jnp.sum(jnp.where(sel, e, 0.0), axis=1, keepdims=True)
        probs_ref[:, j:j + 1] = val * inv


def intent_classifier_forward(sentence_tensor, params, topk: int = 1,
                              *, batch_tile: int = 8):
    """JAX wrapper mirroring ScriptableIntentClassifier.forward, batched.

    sentence_tensor: (B, S) int32 token ids (the TorchScript export only ever
    used B == 1; batching amortizes launch + weight-DMA overhead).
    Returns (topk_probs, topk_preds): shape (B, k), or (k,) when B == 1 to
    mirror the original `.squeeze(0)`.
    """
    emb, w1, b1, w2, b2 = (params["emb"], params["w1"], params["b1"],
                           params["w2"], params["b2"])
    vocab, embed_dim = emb.shape
    hidden = w1.shape[1]
    num_labels = w2.shape[1]
    k = num_labels if topk == -1 else topk

    ids = jnp.asarray(sentence_tensor, jnp.int32)
    if ids.ndim == 1:
        ids = ids[None, :]
    B, S = ids.shape
    ids = jnp.clip(ids, 0, vocab - 1)        # guard out-of-range token ids

    # Lane-dense label padding: padded logits get a huge negative bias and are
    # additionally masked by lane index inside the kernel.
    Lp = _round_up(max(num_labels, 1), 128)
    w2p = jnp.pad(w2, ((0, 0), (0, Lp - num_labels)))
    b2p = jnp.pad(b2.reshape(1, -1), ((0, 0), (0, Lp - num_labels)),
                  constant_values=-1e9).astype(jnp.float32)
    b1p = b1.reshape(1, -1).astype(jnp.float32)

    if batch_tile % 8:
        raise ValueError("batch_tile must be a multiple of 8")
    TB = batch_tile
    Bp = _round_up(B, TB)
    if Bp != B:
        ids = jnp.pad(ids, ((0, Bp - B), (0, 0)))

    wdt = emb.dtype                          # f32, or bf16 (v6e/v7x DMA win)

    kernel = functools.partial(_intent_kernel, num_labels=num_labels, k=k)
    probs, preds = pl.pallas_call(
        kernel,
        grid=(Bp // TB,),
        in_specs=[
            pl.BlockSpec((TB, S), lambda i: (i, 0)),
            pl.BlockSpec((vocab, embed_dim), lambda i: (0, 0)),
            pl.BlockSpec((embed_dim, hidden), lambda i: (0, 0)),
            pl.BlockSpec((1, hidden), lambda i: (0, 0)),
            pl.BlockSpec((hidden, Lp), lambda i: (0, 0)),
            pl.BlockSpec((1, Lp), lambda i: (0, 0)),
        ],
        out_specs=(pl.BlockSpec((TB, k), lambda i: (i, 0)),
                   pl.BlockSpec((TB, k), lambda i: (i, 0))),
        out_shape=(jax.ShapeDtypeStruct((Bp, k), jnp.float32),
                   jax.ShapeDtypeStruct((Bp, k), jnp.int32)),
        compiler_params=pltpu.CompilerParams(
            dimension_semantics=("parallel",)),
    )(ids, emb.astype(wdt), w1.astype(wdt), b1p, w2p.astype(wdt), b2p)

    probs, preds = probs[:B], preds[:B]
    if B == 1:
        probs, preds = probs[0], preds[0]    # mirror torch .squeeze(0)
    return probs, preds


def make_params(key, vocab=128, embed_dim=128, hidden=128, num_labels=16):
    k0, k1, k2, k3, k4 = jax.random.split(key, 5)
    return {
        "emb": jax.random.normal(k0, (vocab, embed_dim), jnp.float32) * 0.1,
        "w1": jax.random.normal(k1, (embed_dim, hidden), jnp.float32) * 0.1,
        "b1": jax.random.normal(k2, (1, hidden), jnp.float32) * 0.01,
        "w2": jax.random.normal(k3, (hidden, num_labels), jnp.float32) * 0.1,
        "b2": jax.random.normal(k4, (1, num_labels), jnp.float32) * 0.01,
    }


def reference_forward(sentence_tensor, params, topk):
    """Pure-JAX reference mirroring the PyTorch semantics (batched)."""
    emb, w1, b1, w2, b2 = (params["emb"], params["w1"], params["b1"],
                           params["w2"], params["b2"])
    ids = jnp.asarray(sentence_tensor, jnp.int32)                  # (B, S)
    x = jnp.take(emb, ids, axis=0)                                 # (B, S, D)
    pooled = jnp.mean(x, axis=1)                                   # (B, D)
    h = jnp.maximum(pooled @ w1 + b1.reshape(1, -1), 0.0)
    logits = h @ w2 + b2.reshape(1, -1)                            # (B, L)
    probs = jax.nn.softmax(logits, axis=1)
    k = probs.shape[1] if topk == -1 else topk
    tp, ti = jax.lax.top_k(probs, k)
    return tp, ti


if __name__ == "__main__":
    key = jax.random.PRNGKey(0)
    pkey, dkey = jax.random.split(key)

    vocab, embed_dim, hidden, num_labels = 128, 128, 128, 16
    batch, seq_len, topk = 16, 8, 3
    params = make_params(pkey, vocab, embed_dim, hidden, num_labels)

    sentences = jax.random.randint(dkey, (batch, seq_len), 0, vocab, jnp.int32)

    # Batched f32 path.
    probs_k, preds_k = intent_classifier_forward(sentences, params, topk=topk)
    probs_k, preds_k = jax.block_until_ready((probs_k, preds_k))

    ref_p, ref_i = reference_forward(sentences, params, topk)
    assert probs_k.shape == (batch, topk) and preds_k.shape == (batch, topk)
    assert jnp.allclose(probs_k, ref_p, atol=1e-5, rtol=1e-5), (probs_k, ref_p)
    assert jnp.array_equal(preds_k, ref_i.astype(jnp.int32)), (preds_k, ref_i)

    # Single-sentence path (original TorchScript usage): batch dim squeezed.
    p1, i1 = intent_classifier_forward(sentences[:1], params, topk=topk)
    p1, i1 = jax.block_until_ready((p1, i1))
    assert p1.shape == (topk,) and i1.shape == (topk,)
    assert jnp.allclose(p1, ref_p[0], atol=1e-5, rtol=1e-5)
    assert jnp.array_equal(i1, ref_i[0].astype(jnp.int32))

    # bf16 weights (v6e/v7x weight-DMA win): MXU-only bf16, elementwise f32.
    params_bf16 = dict(params,
                       emb=params["emb"].astype(jnp.bfloat16),
                       w1=params["w1"].astype(jnp.bfloat16),
                       w2=params["w2"].astype(jnp.bfloat16))
    pb, ib = intent_classifier_forward(sentences, params_bf16, topk=topk)
    pb, ib = jax.block_until_ready((pb, ib))
    assert pb.shape == (batch, topk) and ib.shape == (batch, topk)
    assert bool(jnp.max(jnp.abs(pb - ref_p)) < 5e-2)

    print("KERNEL_OK")
</pallas_src>

<mosaic_0001>
module attributes {stable_mosaic.version = 11 : i64} {
  func.func @_intent_kernel(%arg0: i32, %arg1: memref<8x8xi32, #tpu.memory_space<vmem>>, %arg2: memref<128x128xf32, #tpu.memory_space<vmem>>, %arg3: memref<128x128xf32, #tpu.memory_space<vmem>>, %arg4: memref<1x128xf32, #tpu.memory_space<vmem>>, %arg5: memref<128x128xf32, #tpu.memory_space<vmem>>, %arg6: memref<1x128xf32, #tpu.memory_space<vmem>>, %arg7: memref<8x3xf32, #tpu.memory_space<vmem>>, %arg8: memref<8x3xi32, #tpu.memory_space<vmem>>) attributes {dimension_semantics = [#tpu.dimension_semantics<parallel>], iteration_bounds = array<i64: 2>, scalar_prefetch = 0 : i64, scratch_operands = 0 : i64, tpu.core_type = #tpu.core_type<tc>, window_params = [{transform_indices = @transform_0, window_bounds = array<i64: 8, 8>}, {pipeline_mode = #tpu.pipeline_mode<synchronous>, transform_indices = @transform_1, window_bounds = array<i64: 128, 128>}, {pipeline_mode = #tpu.pipeline_mode<synchronous>, transform_indices = @transform_2, window_bounds = array<i64: 128, 128>}, {pipeline_mode = #tpu.pipeline_mode<synchronous>, transform_indices = @transform_3, window_bounds = array<i64: 1, 128>}, {pipeline_mode = #tpu.pipeline_mode<synchronous>, transform_indices = @transform_4, window_bounds = array<i64: 128, 128>}, {pipeline_mode = #tpu.pipeline_mode<synchronous>, transform_indices = @transform_5, window_bounds = array<i64: 1, 128>}, {transform_indices = @transform_6, window_bounds = array<i64: 8, 3>}, {transform_indices = @transform_7, window_bounds = array<i64: 8, 3>}]} {
    %c0 = arith.constant 0 : index
    %c0_0 = arith.constant 0 : index
    %0 = vector.load %arg1[%c0, %c0_0] : memref<8x8xi32, #tpu.memory_space<vmem>>, vector<8x8xi32>
    %1 = tpu.iota {dimensions = array<i32: 1>} : vector<8x128xi32>
    %cst = arith.constant 0.000000e+00 : f32
    %2 = vector.broadcast %cst : f32 to vector<8x128xf32>
    %3 = vector.extract_strided_slice %0 {offsets = [0, 0], sizes = [8, 1], strides = [1, 1]} : vector<8x8xi32> to vector<8x1xi32>
    %4 = vector.broadcast %3 : vector<8x1xi32> to vector<8x128xi32>
    %5 = arith.cmpi eq, %1, %4 : vector<8x128xi32>
    %6 = arith.extui %5 : vector<8x128xi1> to vector<8x128xi32>
    %7 = arith.sitofp %6 : vector<8x128xi32> to vector<8x128xf32>
    %8 = arith.addf %2, %7 : vector<8x128xf32>
    %9 = vector.extract_strided_slice %0 {offsets = [0, 1], sizes = [8, 1], strides = [1, 1]} : vector<8x8xi32> to vector<8x1xi32>
    %10 = vector.broadcast %9 : vector<8x1xi32> to vector<8x128xi32>
    %11 = arith.cmpi eq, %1, %10 : vector<8x128xi32>
    %12 = arith.extui %11 : vector<8x128xi1> to vector<8x128xi32>
    %13 = arith.sitofp %12 : vector<8x128xi32> to vector<8x128xf32>
    %14 = arith.addf %8, %13 : vector<8x128xf32>
    %15 = vector.extract_strided_slice %0 {offsets = [0, 2], sizes = [8, 1], strides = [1, 1]} : vector<8x8xi32> to vector<8x1xi32>
    %16 = vector.broadcast %15 : vector<8x1xi32> to vector<8x128xi32>
    %17 = arith.cmpi eq, %1, %16 : vector<8x128xi32>
    %18 = arith.extui %17 : vector<8x128xi1> to vector<8x128xi32>
    %19 = arith.sitofp %18 : vector<8x128xi32> to vector<8x128xf32>
    %20 = arith.addf %14, %19 : vector<8x128xf32>
    %21 = vector.extract_strided_slice %0 {offsets = [0, 3], sizes = [8, 1], strides = [1, 1]} : vector<8x8xi32> to vector<8x1xi32>
    %22 = vector.broadcast %21 : vector<8x1xi32> to vector<8x128xi32>
    %23 = arith.cmpi eq, %1, %22 : vector<8x128xi32>
    %24 = arith.extui %23 : vector<8x128xi1> to vector<8x128xi32>
    %25 = arith.sitofp %24 : vector<8x128xi32> to vector<8x128xf32>
    %26 = arith.addf %20, %25 : vector<8x128xf32>
    %27 = vector.extract_strided_slice %0 {offsets = [0, 4], sizes = [8, 1], strides = [1, 1]} : vector<8x8xi32> to vector<8x1xi32>
    %28 = vector.broadcast %27 : vector<8x1xi32> to vector<8x128xi32>
    %29 = arith.cmpi eq, %1, %28 : vector<8x128xi32>
    %30 = arith.extui %29 : vector<8x128xi1> to vector<8x128xi32>
    %31 = arith.sitofp %30 : vector<8x128xi32> to vector<8x128xf32>
    %32 = arith.addf %26, %31 : vector<8x128xf32>
    %33 = vector.extract_strided_slice %0 {offsets = [0, 5], sizes = [8, 1], strides = [1, 1]} : vector<8x8xi32> to vector<8x1xi32>
    %34 = vector.broadcast %33 : vector<8x1xi32> to vector<8x128xi32>
    %35 = arith.cmpi eq, %1, %34 : vector<8x128xi32>
    %36 = arith.extui %35 : vector<8x128xi1> to vector<8x128xi32>
    %37 = arith.sitofp %36 : vector<8x128xi32> to vector<8x128xf32>
    %38 = arith.addf %32, %37 : vector<8x128xf32>
    %39 = vector.extract_strided_slice %0 {offsets = [0, 6], sizes = [8, 1], strides = [1, 1]} : vector<8x8xi32> to vector<8x1xi32>
    %40 = vector.broadcast %39 : vector<8x1xi32> to vector<8x128xi32>
    %41 = arith.cmpi eq, %1, %40 : vector<8x128xi32>
    %42 = arith.extui %41 : vector<8x128xi1> to vector<8x128xi32>
    %43 = arith.sitofp %42 : vector<8x128xi32> to vector<8x128xf32>
    %44 = arith.addf %38, %43 : vector<8x128xf32>
    %45 = vector.extract_strided_slice %0 {offsets = [0, 7], sizes = [8, 1], strides = [1, 1]} : vector<8x8xi32> to vector<8x1xi32>
    %46 = vector.broadcast %45 : vector<8x1xi32> to vector<8x128xi32>
    %47 = arith.cmpi eq, %1, %46 : vector<8x128xi32>
    %48 = arith.extui %47 : vector<8x128xi1> to vector<8x128xi32>
    %49 = arith.sitofp %48 : vector<8x128xi32> to vector<8x128xf32>
    %50 = arith.addf %44, %49 : vector<8x128xf32>
    %cst_1 = arith.constant 1.250000e-01 : f32
    %51 = vector.broadcast %cst_1 : f32 to vector<8x128xf32>
    %52 = arith.mulf %50, %51 : vector<8x128xf32>
    %c0_2 = arith.constant 0 : index
    %c0_3 = arith.constant 0 : index
    %53 = vector.load %arg2[%c0_2, %c0_3] : memref<128x128xf32, #tpu.memory_space<vmem>>, vector<128x128xf32>
    %cst_4 = arith.constant dense<0.000000e+00> : vector<8x128xf32>
    %54 = tpu.matmul %52, %53, %cst_4 {dimension_numbers = #tpu.dot_dimension_numbers<[1], [0], [0], [1], [0, 0, 1, 1], [], []>} : vector<8x128xf32>, vector<128x128xf32>, vector<8x128xf32> -> vector<8x128xf32>
    %c0_5 = arith.constant 0 : index
    %c0_6 = arith.constant 0 : index
    %55 = vector.load %arg3[%c0_5, %c0_6] : memref<128x128xf32, #tpu.memory_space<vmem>>, vector<128x128xf32>
    %cst_7 = arith.constant dense<0.000000e+00> : vector<8x128xf32>
    %56 = tpu.matmul %54, %55, %cst_7 {dimension_numbers = #tpu.dot_dimension_numbers<[1], [0], [0], [1], [0, 0, 1, 1], [], []>} : vector<8x128xf32>, vector<128x128xf32>, vector<8x128xf32> -> vector<8x128xf32>
    %c0_8 = arith.constant 0 : index
    %c0_9 = arith.constant 0 : index
    %57 = vector.load %arg4[%c0_8, %c0_9] : memref<1x128xf32, #tpu.memory_space<vmem>>, vector<1x128xf32>
    %58 = vector.broadcast %57 : vector<1x128xf32> to vector<8x128xf32>
    %59 = arith.addf %56, %58 : vector<8x128xf32>
    %cst_10 = arith.constant 0.000000e+00 : f32
    %60 = vector.broadcast %cst_10 : f32 to vector<8x128xf32>
    %61 = arith.maximumf %59, %60 : vector<8x128xf32>
    %c0_11 = arith.constant 0 : index
    %c0_12 = arith.constant 0 : index
    %62 = vector.load %arg5[%c0_11, %c0_12] : memref<128x128xf32, #tpu.memory_space<vmem>>, vector<128x128xf32>
    %cst_13 = arith.constant dense<0.000000e+00> : vector<8x128xf32>
    %63 = tpu.matmul %61, %62, %cst_13 {dimension_numbers = #tpu.dot_dimension_numbers<[1], [0], [0], [1], [0, 0, 1, 1], [], []>} : vector<8x128xf32>, vector<128x128xf32>, vector<8x128xf32> -> vector<8x128xf32>
    %c0_14 = arith.constant 0 : index
    %c0_15 = arith.constant 0 : index
    %64 = vector.load %arg6[%c0_14, %c0_15] : memref<1x128xf32, #tpu.memory_space<vmem>>, vector<1x128xf32>
    %65 = vector.broadcast %64 : vector<1x128xf32> to vector<8x128xf32>
    %66 = arith.addf %63, %65 : vector<8x128xf32>
    %67 = tpu.iota {dimensions = array<i32: 1>} : vector<8x128xi32>
    %c16_i32 = arith.constant 16 : i32
    %68 = vector.broadcast %c16_i32 : i32 to vector<8x128xi32>
    %69 = arith.cmpi slt, %67, %68 : vector<8x128xi32>
    %cst_16 = arith.constant dense<0xFF800000> : vector<8xf32>
    %70 = vector.multi_reduction <maximumf>, %66, %cst_16 [1] : vector<8x128xf32> to vector<8xf32>
    %71 = vector.shape_cast %70 : vector<8xf32> to vector<8x1xf32>
    %72 = vector.broadcast %71 : vector<8x1xf32> to vector<8x128xf32>
    %73 = arith.subf %66, %72 : vector<8x128xf32>
    %74 = math.exp %73 : vector<8x128xf32>
    %cst_17 = arith.constant 0.000000e+00 : f32
    %75 = vector.broadcast %cst_17 : f32 to vector<8x128xf32>
    %76 = arith.select %69, %74, %75 : vector<8x128xi1>, vector<8x128xf32>
    %cst_18 = arith.constant dense<0.000000e+00> : vector<8xf32>
    %77 = vector.multi_reduction <add>, %76, %cst_18 [1] : vector<8x128xf32> to vector<8xf32>
    %78 = vector.shape_cast %77 : vector<8xf32> to vector<8x1xf32>
    %79 = tpu.reciprocal %78 : vector<8x1xf32> -> vector<8x1xf32>
    %c127_i32 = arith.constant 127 : i32
    %80 = vector.broadcast %c127_i32 : i32 to vector<8x128xi32>
    %81 = arith.subi %80, %67 : vector<8x128xi32>
    %cst_19 = arith.constant -1.000000e+00 : f32
    %82 = vector.broadcast %cst_19 : f32 to vector<8x128xf32>
    %83 = arith.select %69, %76, %82 : vector<8x128xi1>, vector<8x128xf32>
    %84 = tpu.bitcast %83 : vector<8x128xf32> -> vector<8x128xi32>
    %c-128_i32 = arith.constant -128 : i32
    %85 = vector.broadcast %c-128_i32 : i32 to vector<8x128xi32>
    %86 = arith.andi %84, %85 : vector<8x128xi32>
    %87 = arith.ori %86, %81 : vector<8x128xi32>
    %cst_20 = arith.constant dense<-2147483648> : vector<8xi32>
    %88 = vector.multi_reduction <maxsi>, %87, %cst_20 [1] : vector<8x128xi32> to vector<8xi32>
    %89 = vector.shape_cast %88 : vector<8xi32> to vector<8x1xi32>
    %c127_i32_21 = arith.constant 127 : i32
    %90 = vector.broadcast %c127_i32_21 : i32 to vector<8x1xi32>
    %91 = arith.andi %89, %90 : vector<8x1xi32>
    %c127_i32_22 = arith.constant 127 : i32
    %92 = vector.broadcast %c127_i32_22 : i32 to vector<8x1xi32>
    %93 = arith.subi %92, %91 : vector<8x1xi32>
    %94 = vector.broadcast %93 : vector<8x1xi32> to vector<8x128xi32>
    %95 = arith.cmpi eq, %67, %94 : vector<8x128xi32>
    %c0_23 = arith.constant 0 : index
    %c0_24 = arith.constant 0 : index
    %96 = vector.load %arg8[%c0_23, %c0_24] : memref<8x3xi32, #tpu.memory_space<vmem>>, vector<8x1xi32>
    tpu.vector_store %arg8[%c0_23, %c0_24], %93 {strides = array<i32>} : memref<8x3xi32, #tpu.memory_space<vmem>>, vector<8x1xi32>,
    %cst_25 = arith.constant -1.000000e+00 : f32
    %97 = vector.broadcast %cst_25 : f32 to vector<8x128xf32>
    %98 = arith.select %95, %97, %83 : vector<8x128xi1>, vector<8x128xf32>
    %99 = tpu.bitcast %98 : vector<8x128xf32> -> vector<8x128xi32>
    %c-128_i32_26 = arith.constant -128 : i32
    %100 = vector.broadcast %c-128_i32_26 : i32 to vector<8x128xi32>
    %101 = arith.andi %99, %100 : vector<8x128xi32>
    %102 = arith.ori %101, %81 : vector<8x128xi32>
    %cst_27 = arith.constant dense<-2147483648> : vector<8xi32>
    %103 = vector.multi_reduction <maxsi>, %102, %cst_27 [1] : vector<8x128xi32> to vector<8xi32>
    %104 = vector.shape_cast %103 : vector<8xi32> to vector<8x1xi32>
    %c127_i32_28 = arith.constant 127 : i32
    %105 = vector.broadcast %c127_i32_28 : i32 to vector<8x1xi32>
    %106 = arith.andi %104, %105 : vector<8x1xi32>
    %c127_i32_29 = arith.constant 127 : i32
    %107 = vector.broadcast %c127_i32_29 : i32 to vector<8x1xi32>
    %108 = arith.subi %107, %106 : vector<8x1xi32>
    %109 = vector.broadcast %108 : vector<8x1xi32> to vector<8x128xi32>
    %110 = arith.cmpi eq, %67, %109 : vector<8x128xi32>
    %c0_30 = arith.constant 0 : index
    %c1 = arith.constant 1 : index
    %111 = vector.load %arg8[%c0_30, %c1] : memref<8x3xi32, #tpu.memory_space<vmem>>, vector<8x1xi32>
    tpu.vector_store %arg8[%c0_30, %c1], %108 {strides = array<i32>} : memref<8x3xi32, #tpu.memory_space<vmem>>, vector<8x1xi32>,
    %cst_31 = arith.constant -1.000000e+00 : f32
    %112 = vector.broadcast %cst_31 : f32 to vector<8x128xf32>
    %113 = arith.select %110, %112, %98 : vector<8x128xi1>, vector<8x128xf32>
    %114 = tpu.bitcast %113 : vector<8x128xf32> -> vector<8x128xi32>
    %c-128_i32_32 = arith.constant -128 : i32
    %115 = vector.broadcast %c-128_i32_32 : i32 to vector<8x128xi32>
    %116 = arith.andi %114, %115 : vector<8x128xi32>
    %117 = arith.ori %116, %81 : vector<8x128xi32>
    %cst_33 = arith.constant dense<-2147483648> : vector<8xi32>
    %118 = vector.multi_reduction <maxsi>, %117, %cst_33 [1] : vector<8x128xi32> to vector<8xi32>
    %119 = vector.shape_cast %118 : vector<8xi32> to vector<8x1xi32>
    %c127_i32_34 = arith.constant 127 : i32
    %120 = vector.broadcast %c127_i32_34 : i32 to vector<8x1xi32>
    %121 = arith.andi %119, %120 : vector<8x1xi32>
    %c127_i32_35 = arith.constant 127 : i32
    %122 = vector.broadcast %c127_i32_35 : i32 to vector<8x1xi32>
    %123 = arith.subi %122, %121 : vector<8x1xi32>
    %124 = vector.broadcast %123 : vector<8x1xi32> to vector<8x128xi32>
    %125 = arith.cmpi eq, %67, %124 : vector<8x128xi32>
    %c0_36 = arith.constant 0 : index
    %c2 = arith.constant 2 : index
    %126 = vector.load %arg8[%c0_36, %c2] : memref<8x3xi32, #tpu.memory_space<vmem>>, vector<8x1xi32>
    tpu.vector_store %arg8[%c0_36, %c2], %123 {strides = array<i32>} : memref<8x3xi32, #tpu.memory_space<vmem>>, vector<8x1xi32>,
    %cst_37 = arith.constant 0.000000e+00 : f32
    %127 = vector.broadcast %cst_37 : f32 to vector<8x128xf32>
    %128 = arith.select %95, %76, %127 : vector<8x128xi1>, vector<8x128xf32>
    %cst_38 = arith.constant dense<0.000000e+00> : vector<8xf32>
    %129 = vector.multi_reduction <add>, %128, %cst_38 [1] : vector<8x128xf32> to vector<8xf32>
    %130 = vector.shape_cast %129 : vector<8xf32> to vector<8x1xf32>
    %131 = arith.mulf %130, %79 : vector<8x1xf32>
    %c0_39 = arith.constant 0 : index
    %c0_40 = arith.constant 0 : index
    %132 = vector.load %arg7[%c0_39, %c0_40] : memref<8x3xf32, #tpu.memory_space<vmem>>, vector<8x1xf32>
    tpu.vector_store %arg7[%c0_39, %c0_40], %131 {strides = array<i32>} : memref<8x3xf32, #tpu.memory_space<vmem>>, vector<8x1xf32>,
    %cst_41 = arith.constant 0.000000e+00 : f32
    %133 = vector.broadcast %cst_41 : f32 to vector<8x128xf32>
    %134 = arith.select %110, %76, %133 : vector<8x128xi1>, vector<8x128xf32>
    %cst_42 = arith.constant dense<0.000000e+00> : vector<8xf32>
    %135 = vector.multi_reduction <add>, %134, %cst_42 [1] : vector<8x128xf32> to vector<8xf32>
    %136 = vector.shape_cast %135 : vector<8xf32> to vector<8x1xf32>
    %137 = arith.mulf %136, %79 : vector<8x1xf32>
    %c0_43 = arith.constant 0 : index
    %c1_44 = arith.constant 1 : index
    %138 = vector.load %arg7[%c0_43, %c1_44] : memref<8x3xf32, #tpu.memory_space<vmem>>, vector<8x1xf32>
    tpu.vector_store %arg7[%c0_43, %c1_44], %137 {strides = array<i32>} : memref<8x3xf32, #tpu.memory_space<vmem>>, vector<8x1xf32>,
    %cst_45 = arith.constant 0.000000e+00 : f32
    %139 = vector.broadcast %cst_45 : f32 to vector<8x128xf32>
    %140 = arith.select %125, %76, %139 : vector<8x128xi1>, vector<8x128xf32>
    %cst_46 = arith.constant dense<0.000000e+00> : vector<8xf32>
    %141 = vector.multi_reduction <add>, %140, %cst_46 [1] : vector<8x128xf32> to vector<8xf32>
    %142 = vector.shape_cast %141 : vector<8xf32> to vector<8x1xf32>
    %143 = arith.mulf %142, %79 : vector<8x1xf32>
    %c0_47 = arith.constant 0 : index
    %c2_48 = arith.constant 2 : index
    %144 = vector.load %arg7[%c0_47, %c2_48] : memref<8x3xf32, #tpu.memory_space<vmem>>, vector<8x1xf32>
    tpu.vector_store %arg7[%c0_47, %c2_48], %143 {strides = array<i32>} : memref<8x3xf32, #tpu.memory_space<vmem>>, vector<8x1xf32>,
    return
  }
  func.func @transform_0(%arg0: i32) -> (i32, i32) {
    %c0_i32 = arith.constant 0 : i32
    %c0_i32_0 = arith.constant 0 : i32
    return %arg0, %c0_i32 : i32, i32
  }
  func.func @transform_1(%arg0: i32) -> (i32, i32) {
    %c0_i32 = arith.constant 0 : i32
    %c0_i32_0 = arith.constant 0 : i32
    %c0_i32_1 = arith.constant 0 : i32
    return %c0_i32, %c0_i32_0 : i32, i32
  }
  func.func @transform_2(%arg0: i32) -> (i32, i32) {
    %c0_i32 = arith.constant 0 : i32
    %c0_i32_0 = arith.constant 0 : i32
    %c0_i32_1 = arith.constant 0 : i32
    return %c0_i32, %c0_i32_0 : i32, i32
  }
  func.func @transform_3(%arg0: i32) -> (i32, i32) {
    %c0_i32 = arith.constant 0 : i32
    %c0_i32_0 = arith.constant 0 : i32
    %c0_i32_1 = arith.constant 0 : i32
    return %c0_i32, %c0_i32_0 : i32, i32
  }
  func.func @transform_4(%arg0: i32) -> (i32, i32) {
    %c0_i32 = arith.constant 0 : i32
    %c0_i32_0 = arith.constant 0 : i32
    %c0_i32_1 = arith.constant 0 : i32
    return %c0_i32, %c0_i32_0 : i32, i32
  }
  func.func @transform_5(%arg0: i32) -> (i32, i32) {
    %c0_i32 = arith.constant 0 : i32
    %c0_i32_0 = arith.constant 0 : i32
    %c0_i32_1 = arith.constant 0 : i32
    return %c0_i32, %c0_i32_0 : i32, i32
  }
  func.func @transform_6(%arg0: i32) -> (i32, i32) {
    %c0_i32 = arith.constant 0 : i32
    %c0_i32_0 = arith.constant 0 : i32
    return %arg0, %c0_i32 : i32, i32
  }
  func.func @transform_7(%arg0: i32) -> (i32, i32) {
    %c0_i32 = arith.constant 0 : i32
    %c0_i32_0 = arith.constant 0 : i32
    return %arg0, %c0_i32 : i32, i32
  }
}

</mosaic_0001>

<llo_original>
// kernel: tpu_custom_call.1
$region0: #{tpu_custom_call.1}
  #allocation0 [shape = 'u32[]', space=smem, size = 0x4, offset = 0x4, fixed_abs, tag = 'smem constant byte address 0x4 - core index']
  #allocation1 [shape = 'u32[144,128]{1,0:T(1,128)}', space=vmem, size = 0x12000, scoped, tag = 'internal scratch']
  %s0 = inlined_call_operand.vmem [shape: s32[16,8], index: 0, kind: input, shape index: {}]
  %s1 = inlined_call_operand.hbm [shape: f32[128,128], index: 1, kind: input, shape index: {}]
  %s2 = inlined_call_operand.hbm [shape: f32[128,128], index: 2, kind: input, shape index: {}]
  %s3 = inlined_call_operand.vmem [shape: f32[1,128], index: 3, kind: input, shape index: {}]
  %s4 = inlined_call_operand.hbm [shape: f32[128,128], index: 4, kind: input, shape index: {}]
  %s5 = inlined_call_operand.vmem [shape: f32[1,128], index: 5, kind: input, shape index: {}]
  %s6 = inlined_call_operand.vmem [shape: f32[16,3], index: 6, kind: output, shape index: {0}]
  %s7 = inlined_call_operand.vmem [shape: s32[16,3], index: 7, kind: output, shape index: {1}]
  %8 = xla_tuple %s6, %s7
  %s9 = sld [smem:[#allocation0]]
  $region77: #{tpu_custom_call.1} parent=0
    _
  %s11 = ssub.s32 1, %s9
  %s12 = scalar_select 0, %s11, %s9
  $region1: #{tpu_custom_call.1} parent=0
    #allocation2 [shape = 'u8[65536]{0}', space=vmem, size = 0x10000, scoped, tag = 'input window, operand 1, single buffered']
    #allocation3 [shape = 's32[2]{0}', space=sflag, size = 0x8, scoped, tag = 'scoped memory for tpu_custom_call.1']
    #allocation4 [shape = 'u8[65536]{0}', space=vmem, size = 0x10000, scoped, tag = 'input window, operand 2, single buffered']
    #allocation5 [shape = 's32[1]{0}', space=sflag, size = 0x4, scoped, tag = 'scoped memory for tpu_custom_call.1']
    #allocation6 [shape = 'u8[65536]{0}', space=vmem, size = 0x10000, scoped, tag = 'input window, operand 4, single buffered']
    %13 = vsyncpa [#allocation3], 0
    %14 = vsyncpa [#allocation5], 0
    loop: start=0, step=1, limit=4
    $region2: #{tpu_custom_call.1} parent=1 // loop_pre_header
      _
    $region3: #{tpu_custom_call.1} parent=1 // loop_header
      %s16 = sphi 0, %s20
      %p17 = scmp.ge.s32.totalorder %s16, 4
      %s26 = sphi 0, %s28
      %s29 = sphi 0, %s26
      %s30 = sphi 0, %s29
      %s46 = sphi 0, %s30
      %s50 = sphi 0, %s50
      %s52 = sphi 0, %s50
      %s53 = sphi 0, %s52
      %s67 = sphi 0, %s53
      %s71 = sphi 0, %s71
      %s73 = sphi 0, %s71
      %s74 = sphi 0, %s73
      %s88 = sphi 0, %s74
      %s92 = sphi 0, %s92
      %s94 = sphi 0, %s92
      %s95 = sphi 0, %s94
      %s109 = sphi 0, %s95
      %s113 = sphi 0, %s113
      %s115 = sphi 0, %s113
      %s116 = sphi 0, %s115
      %s130 = sphi 0, %s116
      %s134 = sphi 0, %s134
      %s136 = sphi 0, %s134
      %s137 = sphi 0, %s136
      %s151 = sphi 0, %s137
      %s157 = sphi 0, %s159
      %s160 = sphi 0, %s157
      %s161 = sphi 0, %s160
      %s177 = sphi 0, %s161
      %s183 = sphi 0, %s185
      %s186 = sphi 0, %s183
      %s187 = sphi 0, %s186
      %s203 = sphi 0, %s187
    $region4: #{tpu_custom_call.1} parent=1 // loop_header_branch
      %19 = sbr.rel (%p17) target = $region8
    $region5: #{tpu_custom_call.1} parent=1 // loop_body
      %s21 = ssub.s32 %s16, 1
      %s22 = ssub.s32 %s16, 2
      %s23 = sadd.s32 %s16, 1
      %s24 = ssub.s32 %s16, %s23
      %p25 = scmp.eq.s32.totalorder %s24, 0
      %s27 = sadd.s32 %s26, 1
      %s28 = scalar_select %p25, %s26, %s27
      %p31 = pneg %p25
      %p32 = scmp.eq.s32.totalorder %s16, 1
      %p33 = por %p31, %p32
      %p34 = scmp.ne.s32.totalorder %s26, %s29
      %p35 = scmp.eq.s32.totalorder %s16, 0
      %p36 = por %p34, %p35
      %p37 = scmp.ne.s32.totalorder %s26, %s29
      %p38 = scmp.eq.s32.totalorder %s21, 1
      %p39 = por %p37, %p38
      %p40 = scmp.ne.s32.totalorder %s29, %s30
      %p41 = scmp.eq.s32.totalorder %s21, 0
      %p42 = por %p40, %p41
      %p43 = scmp.ne.s32.totalorder %s29, %s30
      %p44 = scmp.eq.s32.totalorder %s22, 1
      %p45 = por %p43, %p44
      %p47 = scmp.ne.s32.totalorder %s30, %s46
      %p48 = scmp.eq.s32.totalorder %s22, 0
      %p49 = por %p47, %p48
      %s51 = sadd.s32 %s50, 1
      %p54 = scmp.eq.s32.totalorder %s16, 1
      %p55 = scmp.ne.s32.totalorder %s50, %s52
      %p56 = scmp.eq.s32.totalorder %s16, 0
      %p57 = por %p55, %p56
      %p58 = scmp.ne.s32.totalorder %s50, %s52
      %p59 = scmp.eq.s32.totalorder %s21, 1
      %p60 = por %p58, %p59
      %p61 = scmp.ne.s32.totalorder %s52, %s53
      %p62 = scmp.eq.s32.totalorder %s21, 0
      %p63 = por %p61, %p62
      %p64 = scmp.ne.s32.totalorder %s52, %s53
      %p65 = scmp.eq.s32.totalorder %s22, 1
      %p66 = por %p64, %p65
      %p68 = scmp.ne.s32.totalorder %s53, %s67
      %p69 = scmp.eq.s32.totalorder %s22, 0
      %p70 = por %p68, %p69
      %s72 = sadd.s32 %s71, 1
      %p75 = scmp.eq.s32.totalorder %s16, 1
      %p76 = scmp.ne.s32.totalorder %s71, %s73
      %p77 = scmp.eq.s32.totalorder %s16, 0
      %p78 = por %p76, %p77
      %p79 = scmp.ne.s32.totalorder %s71, %s73
      %p80 = scmp.eq.s32.totalorder %s21, 1
      %p81 = por %p79, %p80
      %p82 = scmp.ne.s32.totalorder %s73, %s74
      %p83 = scmp.eq.s32.totalorder %s21, 0
      %p84 = por %p82, %p83
      %p85 = scmp.ne.s32.totalorder %s73, %s74
      %p86 = scmp.eq.s32.totalorder %s22, 1
      %p87 = por %p85, %p86
      %p89 = scmp.ne.s32.totalorder %s74, %s88
      %p90 = scmp.eq.s32.totalorder %s22, 0
      %p91 = por %p89, %p90
      %s93 = sadd.s32 %s92, 1
      %p96 = scmp.eq.s32.totalorder %s16, 1
      %p97 = scmp.ne.s32.totalorder %s92, %s94
      %p98 = scmp.eq.s32.totalorder %s16, 0
      %p99 = por %p97, %p98
      %p100 = scmp.ne.s32.totalorder %s92, %s94
      %p101 = scmp.eq.s32.totalorder %s21, 1
      %p102 = por %p100, %p101
      %p103 = scmp.ne.s32.totalorder %s94, %s95
      %p104 = scmp.eq.s32.totalorder %s21, 0
      %p105 = por %p103, %p104
      %p106 = scmp.ne.s32.totalorder %s94, %s95
      %p107 = scmp.eq.s32.totalorder %s22, 1
      %p108 = por %p106, %p107
      %p110 = scmp.ne.s32.totalorder %s95, %s109
      %p111 = scmp.eq.s32.totalorder %s22, 0
      %p112 = por %p110, %p111
      %s114 = sadd.s32 %s113, 1
      %p117 = scmp.eq.s32.totalorder %s16, 1
      %p118 = scmp.ne.s32.totalorder %s113, %s115
      %p119 = scmp.eq.s32.totalorder %s16, 0
      %p120 = por %p118, %p119
      %p121 = scmp.ne.s32.totalorder %s113, %s115
      %p122 = scmp.eq.s32.totalorder %s21, 1
      %p123 = por %p121, %p122
      %p124 = scmp.ne.s32.totalorder %s115, %s116
      %p125 = scmp.eq.s32.totalorder %s21, 0
      %p126 = por %p124, %p125
      %p127 = scmp.ne.s32.totalorder %s115, %s116
      %p128 = scmp.eq.s32.totalorder %s22, 1
      %p129 = por %p127, %p128
      %p131 = scmp.ne.s32.totalorder %s116, %s130
      %p132 = scmp.eq.s32.totalorder %s22, 0
      %p133 = por %p131, %p132
      %s135 = sadd.s32 %s134, 1
      %p138 = scmp.eq.s32.totalorder %s16, 1
      %p139 = scmp.ne.s32.totalorder %s134, %s136
      %p140 = scmp.eq.s32.totalorder %s16, 0
      %p141 = por %p139, %p140
      %p142 = scmp.ne.s32.totalorder %s134, %s136
      %p143 = scmp.eq.s32.totalorder %s21, 1
      %p144 = por %p142, %p143
      %p145 = scmp.ne.s32.totalorder %s136, %s137
      %p146 = scmp.eq.s32.totalorder %s21, 0
      %p147 = por %p145, %p146
      %p148 = scmp.ne.s32.totalorder %s136, %s137
      %p149 = scmp.eq.s32.totalorder %s22, 1
      %p150 = por %p148, %p149
      %p152 = scmp.ne.s32.totalorder %s137, %s151
      %p153 = scmp.eq.s32.totalorder %s22, 0
      %p154 = por %p152, %p153
      %s155 = ssub.s32 %s16, %s23
      %p156 = scmp.eq.s32.totalorder %s155, 0
      %s158 = sadd.s32 %s157, 1
      %s159 = scalar_select %p156, %s157, %s158
      %p162 = pneg %p156
      %p163 = scmp.eq.s32.totalorder %s16, 1
      %p164 = por %p162, %p163
      %p165 = scmp.ne.s32.totalorder %s157, %s160
      %p166 = scmp.eq.s32.totalorder %s16, 0
      %p167 = por %p165, %p166
      %p168 = scmp.ne.s32.totalorder %s157, %s160
      %p169 = scmp.eq.s32.totalorder %s21, 1
      %p170 = por %p168, %p169
      %p171 = scmp.ne.s32.totalorder %s160, %s161
      %p172 = scmp.eq.s32.totalorder %s21, 0
      %p173 = por %p171, %p172
      %p174 = scmp.ne.s32.totalorder %s160, %s161
      %p175 = scmp.eq.s32.totalorder %s22, 1
      %p176 = por %p174, %p175
      %p178 = scmp.ne.s32.totalorder %s161, %s177
      %p179 = scmp.eq.s32.totalorder %s22, 0
      %p180 = por %p178, %p179
      %s181 = ssub.s32 %s16, %s23
      %p182 = scmp.eq.s32.totalorder %s181, 0
      %s184 = sadd.s32 %s183, 1
      %s185 = scalar_select %p182, %s183, %s184
      %p188 = pneg %p182
      %p189 = scmp.eq.s32.totalorder %s16, 1
      %p190 = por %p188, %p189
      %p191 = scmp.ne.s32.totalorder %s183, %s186
      %p192 = scmp.eq.s32.totalorder %s16, 0
      %p193 = por %p191, %p192
      %p194 = scmp.ne.s32.totalorder %s183, %s186
      %p195 = scmp.eq.s32.totalorder %s21, 1
      %p196 = por %p194, %p195
      %p197 = scmp.ne.s32.totalorder %s186, %s187
      %p198 = scmp.eq.s32.totalorder %s21, 0
      %p199 = por %p197, %p198
      %p200 = scmp.ne.s32.totalorder %s186, %s187
      %p201 = scmp.eq.s32.totalorder %s22, 1
      %p202 = por %p200, %p201
      %p204 = scmp.ne.s32.totalorder %s187, %s203
      %p205 = scmp.eq.s32.totalorder %s22, 0
      %p206 = por %p204, %p205
      %p207 = scmp.le.s32.totalorder 1, %s16
      %p208 = scmp.lt.s32.totalorder %s16, 3
      %p209 = pnand %p207, %p208
      %p210 = pneg %p209
      // Predicated region
      $region9: #{tpu_custom_call.1} parent=5 // pred_check
        _
      $region10: #{tpu_custom_call.1} parent=5 // pred_check_branch
        %212 = sbr.rel (%p209) target = $region12
      $region11: #{tpu_custom_call.1} parent=5 // pred_region
        %s213 = ssub.s32 %s16, 1
        // Predicated region
        $region13: #{tpu_custom_call.1} parent=11 // pred_check
          %p214 = pneg %p63
        $region14: #{tpu_custom_call.1} parent=11 // pred_check_branch
          %216 = sbr.rel (%p214) target = $region16
        $region15: #{tpu_custom_call.1} parent=11 // pred_region
          %s218 = ssub.s32 2048, 2048
          %219 = vsyncadd [#allocation3], %s218
          %s220 = sshll.u32 [#allocation2], 4
          %s221 = int_to_ptr.vmem [resolvable:$true] %s220
          %226 = dma.hbm_to_vmem [thread:$0]  %s1, 2048, %s221, [#allocation3], 128, 128, 8
        $region16: #{tpu_custom_call.1} parent=11 // pred_fallthru
          _
        // Predicated region
        $region17: #{tpu_custom_call.1} parent=11 // pred_check
          %p227 = pneg %p84
        $region18: #{tpu_custom_call.1} parent=11 // pred_check_branch
          %229 = sbr.rel (%p227) target = $region20
        $region19: #{tpu_custom_call.1} parent=11 // pred_region
          %s231 = ssub.s32 2048, 2048
          %232 = vsyncadd [#allocation5], %s231
          %s233 = sshll.u32 [#allocation4], 4
          %s234 = int_to_ptr.vmem [resolvable:$true] %s233
          %239 = dma.hbm_to_vmem [thread:$0]  %s2, 2048, %s234, [#allocation5], 128, 128, 8
        $region20: #{tpu_custom_call.1} parent=11 // pred_fallthru
          _
        // Predicated region
        $region21: #{tpu_custom_call.1} parent=11 // pred_check
          %p240 = pneg %p105
        $region22: #{tpu_custom_call.1} parent=11 // pred_check_branch
          %242 = sbr.rel (%p240) target = $region24
        $region23: #{tpu_custom_call.1} parent=11 // pred_region
          _
        $region24: #{tpu_custom_call.1} parent=11 // pred_fallthru
          _
        // Predicated region
        $region25: #{tpu_custom_call.1} parent=11 // pred_check
          %p243 = pneg %p126
        $region26: #{tpu_custom_call.1} parent=11 // pred_check_branch
          %245 = sbr.rel (%p243) target = $region28
        $region27: #{tpu_custom_call.1} parent=11 // pred_region
          %s247 = ssub.s32 2048, 2048
          %248 = vsyncadd [#allocation5], %s247
          %s249 = sshll.u32 [#allocation6], 4
          %s250 = int_to_ptr.vmem [resolvable:$true] %s249
          %255 = dma.hbm_to_vmem [thread:$0]  %s4, 2048, %s250, [#allocation5], 128, 128, 8
        $region28: #{tpu_custom_call.1} parent=11 // pred_fallthru
          _
        // Predicated region
        $region29: #{tpu_custom_call.1} parent=11 // pred_check
          %p256 = pneg %p147
        $region30: #{tpu_custom_call.1} parent=11 // pred_check_branch
          %258 = sbr.rel (%p256) target = $region32
        $region31: #{tpu_custom_call.1} parent=11 // pred_region
          _
        $region32: #{tpu_custom_call.1} parent=11 // pred_fallthru
          _
      $region12: #{tpu_custom_call.1} parent=5 // pred_fallthru
        _
      %p259 = scmp.lt.s32.totalorder %s16, 2
      // Predicated region
      $region33: #{tpu_custom_call.1} parent=5 // pred_check
        %p260 = pneg %p259
      $region34: #{tpu_custom_call.1} parent=5 // pred_check_branch
        %262 = sbr.rel (%p260) target = $region36
      $region35: #{tpu_custom_call.1} parent=5 // pred_region
        // Predicated region
        $region37: #{tpu_custom_call.1} parent=35 // pred_check
          %p263 = pneg %p36
        $region38: #{tpu_custom_call.1} parent=35 // pred_check_branch
          %265 = sbr.rel (%p263) target = $region40
        $region39: #{tpu_custom_call.1} parent=35 // pred_region
          %p266 = scmp.lt.s32.totalorder %s16, 1
          %s267 = scalar_select %p266, %s16, 1
          %s268 = smul.addr %s267, 8
          %s269 = scalar_lea.vmem %s0, %s268
        $region40: #{tpu_custom_call.1} parent=35 // pred_fallthru
          _
      $region36: #{tpu_custom_call.1} parent=5 // pred_fallthru
        _
      %p270 = scmp.le.s32.totalorder 1, %s16
      %p271 = scmp.lt.s32.totalorder %s16, 3
      %p272 = pnand %p270, %p271
      %p273 = pneg %p272
      // Predicated region
      $region41: #{tpu_custom_call.1} parent=5 // pred_check
        _
      $region42: #{tpu_custom_call.1} parent=5 // pred_check_branch
        %275 = sbr.rel (%p272) target = $region44
      $region43: #{tpu_custom_call.1} parent=5 // pred_region
        %s276 = ssub.s32 %s16, 1
        // Predicated region
        $region45: #{tpu_custom_call.1} parent=43 // pred_check
          %p277 = pneg %p63
        $region46: #{tpu_custom_call.1} parent=43 // pred_check_branch
          %279 = sbr.rel (%p277) target = $region48
        $region47: #{tpu_custom_call.1} parent=43 // pred_region
          %280 = dma.done [#allocation3], 2048
        $region48: #{tpu_custom_call.1} parent=43 // pred_fallthru
          _
        // Predicated region
        $region49: #{tpu_custom_call.1} parent=43 // pred_check
          %p281 = pneg %p84
        $region50: #{tpu_custom_call.1} parent=43 // pred_check_branch
          %283 = sbr.rel (%p281) target = $region52
        $region51: #{tpu_custom_call.1} parent=43 // pred_region
          %284 = dma.done [#allocation5], 2048
        $region52: #{tpu_custom_call.1} parent=43 // pred_fallthru
          _
        // Predicated region
        $region53: #{tpu_custom_call.1} parent=43 // pred_check
          %p285 = pneg %p126
        $region54: #{tpu_custom_call.1} parent=43 // pred_check_branch
          %287 = sbr.rel (%p285) target = $region56
        $region55: #{tpu_custom_call.1} parent=43 // pred_region
          %288 = dma.done [#allocation5], 2048
        $region56: #{tpu_custom_call.1} parent=43 // pred_fallthru
          _
        %p289 = scmp.lt.s32.totalorder %s21, 1
        %s290 = scalar_select %p289, %s21, 1
        %s291 = smul.addr %s290, 8
        %s292 = scalar_lea.vmem %s0, %s291
        %p293 = pneg %p42
        %p294 = pneg %p39
        %p295 = pneg %p63
        %p296 = pneg %p60
        %p297 = pneg %p84
        %p298 = pneg %p81
        %p299 = pneg %p105
        %p300 = pneg %p102
        %p301 = pneg %p126
        %p302 = pneg %p123
        %p303 = pneg %p147
        %p304 = pneg %p144
        %p305 = pneg %p173
        %p306 = pneg %p170
        %p307 = scmp.lt.s32.totalorder %s21, 1
        %s308 = scalar_select %p307, %s21, 1
        %s309 = smul.addr %s308, 8
        %s310 = scalar_lea.vmem %s6, %s309
        %p311 = pneg %p199
        %p312 = pneg %p196
        %p313 = scmp.lt.s32.totalorder %s21, 1
        %s314 = scalar_select %p313, %s21, 1
        %s315 = smul.addr %s314, 8
        %s316 = scalar_lea.vmem %s7, %s315
        %p317 = scmp.lt.s32.totalorder %s21, 1
        %s318 = scalar_select %p317, %s21, 1
        %s319 = smul.addr %s318, 8
        %s320 = scalar_lea.vmem %s0, %s319
        %p321 = scmp.lt.s32.totalorder %s21, 1
        %s322 = scalar_select %p321, %s21, 1
        %s323 = smul.addr %s322, 8
        %s324 = scalar_lea.vmem %s6, %s323
        %p325 = scmp.lt.s32.totalorder %s21, 1
        %s326 = scalar_select %p325, %s21, 1
        %s327 = smul.addr %s326, 8
        %s328 = scalar_lea.vmem %s7, %s327
        %v329 = vld [vmem:[%s320] sm:$0xff]
        %v330 = vlaneseq
        %v331 = vand.u32 %v330, 127
        %332 = vset.pattern.permute.xlu0 0
        %333 = vperm.xlu0 %332, %v329
        %v334 = vpop.permute.xlu0 %333
        %vm335 = vcmp.eq.s32.totalorder %v331, %v334
        %v336 = vsel %vm335, 1, 0
        %v337 = vcvt.s32.f32 %v336
        %v338 = vadd.f32 %v337, 0.0
        %339 = vset.pattern.permute.xlu0 1
        %340 = vperm.xlu0 %339, %v329
        %v341 = vpop.permute.xlu0 %340
        %vm342 = vcmp.eq.s32.totalorder %v331, %v341
        %v343 = vsel %vm342, 1, 0
        %v344 = vcvt.s32.f32 %v343
        %v345 = vadd.f32 %v338, %v344
        %346 = vset.pattern.permute.xlu0 2
        %347 = vperm.xlu0 %346, %v329
        %v348 = vpop.permute.xlu0 %347
        %vm349 = vcmp.eq.s32.totalorder %v331, %v348
        %v350 = vsel %vm349, 1, 0
        %v351 = vcvt.s32.f32 %v350
        %v352 = vadd.f32 %v345, %v351
        %353 = vset.pattern.permute.xlu0 3
        %354 = vperm.xlu0 %353, %v329
        %v355 = vpop.permute.xlu0 %354
        %vm356 = vcmp.eq.s32.totalorder %v331, %v355
        %v357 = vsel %vm356, 1, 0
        %v358 = vcvt.s32.f32 %v357
        %v359 = vadd.f32 %v352, %v358
        %360 = vset.pattern.permute.xlu0 4
        %361 = vperm.xlu0 %360, %v329
        %v362 = vpop.permute.xlu0 %361
        %vm363 = vcmp.eq.s32.totalorder %v331, %v362
        %v364 = vsel %vm363, 1, 0
        %v365 = vcvt.s32.f32 %v364
        %v366 = vadd.f32 %v359, %v365
        %367 = vset.pattern.permute.xlu0 5
        %368 = vperm.xlu0 %367, %v329
        %v369 = vpop.permute.xlu0 %368
        %vm370 = vcmp.eq.s32.totalorder %v331, %v369
        %v371 = vsel %vm370, 1, 0
        %v372 = vcvt.s32.f32 %v371
        %v373 = vadd.f32 %v366, %v372
        %374 = vset.pattern.permute.xlu0 6
        %375 = vperm.xlu0 %374, %v329
        %v376 = vpop.permute.xlu0 %375
        %vm377 = vcmp.eq.s32.totalorder %v331, %v376
        %v378 = vsel %vm377, 1, 0
        %v379 = vcvt.s32.f32 %v378
        %v380 = vadd.f32 %v373, %v379
        %381 = vset.pattern.permute.xlu0 7
        %382 = vperm.xlu0 %381, %v329
        %v383 = vpop.permute.xlu0 %382
        %vm384 = vcmp.eq.s32.totalorder %v331, %v383
        %v385 = vsel %vm384, 1, 0
        %v386 = vcvt.s32.f32 %v385
        %v387 = vadd.f32 %v380, %v386
        %v388 = vmul.f32 %v387, 0.125
        %v389 = vld [vmem:[#allocation2] sm:$0xff]
        %v390 = vld [vmem:[#allocation2 + $0x8] sm:$0xff]
        %v391 = vld [vmem:[#allocation2 + $0x10] sm:$0xff]
        %v392 = vld [vmem:[#allocation2 + $0x18] sm:$0xff]
        %v393 = vld [vmem:[#allocation2 + $0x20] sm:$0xff]
        %v394 = vld [vmem:[#allocation2 + $0x28] sm:$0xff]
        %v395 = vld [vmem:[#allocation2 + $0x30] sm:$0xff]
        %v396 = vld [vmem:[#allocation2 + $0x38] sm:$0xff]
        %v397 = vld [vmem:[#allocation2 + $0x40] sm:$0xff]
        %v398 = vld [vmem:[#allocation2 + $0x48] sm:$0xff]
        %v399 = vld [vmem:[#allocation2 + $0x50] sm:$0xff]
        %v400 = vld [vmem:[#allocation2 + $0x58] sm:$0xff]
        %v401 = vld [vmem:[#allocation2 + $0x60] sm:$0xff]
        %v402 = vld [vmem:[#allocation2 + $0x68] sm:$0xff]
        %v403 = vld [vmem:[#allocation2 + $0x70] sm:$0xff]
        %v404 = vld [vmem:[#allocation2 + $0x78] sm:$0xff]
        %405 = vmatprep.subr.mxu0 0.0
        %406 = vmatpush1.msra.mxu0 %v389
        %407 = vmatprep.subr.mxu0 0.0
        %408 = vmatpush1.msra.mxu0 %v390
        %409 = vmatprep.subr.mxu0 0.0
        %410 = vmatpush1.msra.mxu0 %v391
        %411 = vmatprep.subr.mxu0 0.0
        %412 = vmatpush1.msra.mxu0 %v392
        %413 = vmatprep.subr.mxu0 0.0
        %414 = vmatpush1.msra.mxu0 %v393
        %415 = vmatprep.subr.mxu0 0.0
        %416 = vmatpush1.msra.mxu0 %v394
        %417 = vmatprep.subr.mxu0 0.0
        %418 = vmatpush1.msra.mxu0 %v395
        %419 = vmatprep.subr.mxu0 0.0
        %420 = vmatpush1.msra.mxu0 %v396
        %421 = vmatprep.subr.mxu0 0.0
        %422 = vmatpush1.msra.mxu0 %v397
        %423 = vmatprep.subr.mxu0 0.0
        %424 = vmatpush1.msra.mxu0 %v398
        %425 = vmatprep.subr.mxu0 0.0
        %426 = vmatpush1.msra.mxu0 %v399
        %427 = vmatprep.subr.mxu0 0.0
        %428 = vmatpush1.msra.mxu0 %v400
        %429 = vmatprep.subr.mxu0 0.0
        %430 = vmatpush1.msra.mxu0 %v401
        %431 = vmatprep.subr.mxu0 0.0
        %432 = vmatpush1.msra.mxu0 %v402
        %433 = vmatprep.subr.mxu0 0.0
        %434 = vmatpush1.msra.mxu0 %v403
        %435 = vmatprep.subr.mxu0 0.0
        %436 = vmatpush1.msra.mxu0 %v404
        %437 = vmatprep.subr.mxu0 0.0
        %438 = vmatpush1.msra.mxu0 0.0
        %439 = vmatprep.subr.mxu0 0.0
        %440 = vmatpush1.msra.mxu0 0.0
        %441 = vmatprep.subr.mxu0 0.0
        %442 = vmatpush1.msra.mxu0 0.0
        %443 = vmatprep.subr.mxu0 0.0
        %444 = vmatpush1.msra.mxu0 0.0
        %445 = vmatprep.subr.mxu0 0.0
        %446 = vmatpush1.msra.mxu0 0.0
        %447 = vmatprep.subr.mxu0 0.0
        %448 = vmatpush1.msra.mxu0 0.0
        %449 = vmatprep.subr.mxu0 0.0
        %450 = vmatpush1.msra.mxu0 0.0
        %451 = vmatprep.subr.mxu0 0.0
        %452 = vmatpush1.msra.mxu0 0.0
        %453 = vmatprep.subr.mxu0 0.0
        %454 = vmatpush1.msra.mxu0 0.0
        %455 = vmatprep.subr.mxu0 0.0
        %456 = vmatpush1.msra.mxu0 0.0
        %457 = vmatprep.subr.mxu0 0.0
        %458 = vmatpush1.msra.mxu0 0.0
        %459 = vmatprep.subr.mxu0 0.0
        %460 = vmatpush1.msra.mxu0 0.0
        %461 = vmatprep.subr.mxu0 0.0
        %462 = vmatpush1.msra.mxu0 0.0
        %463 = vmatprep.subr.mxu0 0.0
        %464 = vmatpush1.msra.mxu0 0.0
        %465 = vmatprep.subr.mxu0 0.0
        %466 = vmatpush1.msra.mxu0 0.0
        %467 = vmatprep.subr.mxu0 0.0
        %468 = vmatpush1.msra.mxu0 0.0
        %469 = vmatprep.mubr.f32.mxu0 0.0
        %470 = vmatmul.mubr.f32.gmra.mrb[0].mxu0 %v388
        %v471 = vpop.f32.mrb[0].mxu0
        %v472 = vadd.f32 0.0, %v471
        %v473 = vpop.f32.mrb[0].mxu0
        %474 = vdwg.mxu0
        %v475 = vld [vmem:[#allocation4] sm:$0xff]
        %v476 = vld [vmem:[#allocation4 + $0x8] sm:$0xff]
        %v477 = vld [vmem:[#allocation4 + $0x10] sm:$0xff]
        %v478 = vld [vmem:[#allocation4 + $0x18] sm:$0xff]
        %v479 = vld [vmem:[#allocation4 + $0x20] sm:$0xff]
        %v480 = vld [vmem:[#allocation4 + $0x28] sm:$0xff]
        %v481 = vld [vmem:[#allocation4 + $0x30] sm:$0xff]
        %v482 = vld [vmem:[#allocation4 + $0x38] sm:$0xff]
        %v483 = vld [vmem:[#allocation4 + $0x40] sm:$0xff]
        %v484 = vld [vmem:[#allocation4 + $0x48] sm:$0xff]
        %v485 = vld [vmem:[#allocation4 + $0x50] sm:$0xff]
        %v486 = vld [vmem:[#allocation4 + $0x58] sm:$0xff]
        %v487 = vld [vmem:[#allocation4 + $0x60] sm:$0xff]
        %v488 = vld [vmem:[#allocation4 + $0x68] sm:$0xff]
        %v489 = vld [vmem:[#allocation4 + $0x70] sm:$0xff]
        %v490 = vld [vmem:[#allocation4 + $0x78] sm:$0xff]
        %v491 = vld [vmem:[%s3] sm:$0x1]
        %v493 = vlaneseq
        %v494 = vshrl.u32 %v493, 7
        %v495 = vsub.s32 0, %v494
        %v496 = vrot.slane %v491, %v495
        %498 = vmatprep.subr.mxu0 0.0
        %499 = vmatpush1.msra.mxu0 %v475
        %500 = vmatprep.subr.mxu0 0.0
        %501 = vmatpush1.msra.mxu0 %v476
        %502 = vmatprep.subr.mxu0 0.0
        %503 = vmatpush1.msra.mxu0 %v477
        %504 = vmatprep.subr.mxu0 0.0
        %505 = vmatpush1.msra.mxu0 %v478
        %506 = vmatprep.subr.mxu0 0.0
        %507 = vmatpush1.msra.mxu0 %v479
        %508 = vmatprep.subr.mxu0 0.0
        %509 = vmatpush1.msra.mxu0 %v480
        %510 = vmatprep.subr.mxu0 0.0
        %511 = vmatpush1.msra.mxu0 %v481
        %512 = vmatprep.subr.mxu0 0.0
        %513 = vmatpush1.msra.mxu0 %v482
        %514 = vmatprep.subr.mxu0 0.0
        %515 = vmatpush1.msra.mxu0 %v483
        %516 = vmatprep.subr.mxu0 0.0
        %517 = vmatpush1.msra.mxu0 %v484
        %518 = vmatprep.subr.mxu0 0.0
        %519 = vmatpush1.msra.mxu0 %v485
        %520 = vmatprep.subr.mxu0 0.0
        %521 = vmatpush1.msra.mxu0 %v486
        %522 = vmatprep.subr.mxu0 0.0
        %523 = vmatpush1.msra.mxu0 %v487
        %524 = vmatprep.subr.mxu0 0.0
        %525 = vmatpush1.msra.mxu0 %v488
        %526 = vmatprep.subr.mxu0 0.0
        %527 = vmatpush1.msra.mxu0 %v489
        %528 = vmatprep.subr.mxu0 0.0
        %529 = vmatpush1.msra.mxu0 %v490
        %530 = vmatprep.subr.mxu0 0.0
        %531 = vmatpush1.msra.mxu0 0.0
        %532 = vmatprep.subr.mxu0 0.0
        %533 = vmatpush1.msra.mxu0 0.0
        %534 = vmatprep.subr.mxu0 0.0
        %535 = vmatpush1.msra.mxu0 0.0
        %536 = vmatprep.subr.mxu0 0.0
        %537 = vmatpush1.msra.mxu0 0.0
        %538 = vmatprep.subr.mxu0 0.0
        %539 = vmatpush1.msra.mxu0 0.0
        %540 = vmatprep.subr.mxu0 0.0
        %541 = vmatpush1.msra.mxu0 0.0
        %542 = vmatprep.subr.mxu0 0.0
        %543 = vmatpush1.msra.mxu0 0.0
        %544 = vmatprep.subr.mxu0 0.0
        %545 = vmatpush1.msra.mxu0 0.0
        %546 = vmatprep.subr.mxu0 0.0
        %547 = vmatpush1.msra.mxu0 0.0
        %548 = vmatprep.subr.mxu0 0.0
        %549 = vmatpush1.msra.mxu0 0.0
        %550 = vmatprep.subr.mxu0 0.0
        %551 = vmatpush1.msra.mxu0 0.0
        %552 = vmatprep.subr.mxu0 0.0
        %553 = vmatpush1.msra.mxu0 0.0
        %554 = vmatprep.subr.mxu0 0.0
        %555 = vmatpush1.msra.mxu0 0.0
        %556 = vmatprep.subr.mxu0 0.0
        %557 = vmatpush1.msra.mxu0 0.0
        %558 = vmatprep.subr.mxu0 0.0
        %559 = vmatpush1.msra.mxu0 0.0
        %560 = vmatprep.subr.mxu0 0.0
        %561 = vmatpush1.msra.mxu0 0.0
        %562 = vmatprep.mubr.f32.mxu0 0.0
        %563 = vmatmul.mubr.f32.gmra.mrb[0].mxu0 %v472
        %v564 = vpop.f32.mrb[0].mxu0
        %v565 = vadd.f32 %v496, %v564
        %v566 = vpop.f32.mrb[0].mxu0
        %567 = vdwg.mxu0
        %v568 = vmax.f32 %v565, 0.0
        %v569 = vld [vmem:[#allocation6] sm:$0xff]
        %v570 = vld [vmem:[#allocation6 + $0x8] sm:$0xff]
        %v571 = vld [vmem:[#allocation6 + $0x10] sm:$0xff]
        %v572 = vld [vmem:[#allocation6 + $0x18] sm:$0xff]
        %v573 = vld [vmem:[#allocation6 + $0x20] sm:$0xff]
        %v574 = vld [vmem:[#allocation6 + $0x28] sm:$0xff]
        %v575 = vld [vmem:[#allocation6 + $0x30] sm:$0xff]
        %v576 = vld [vmem:[#allocation6 + $0x38] sm:$0xff]
        %v577 = vld [vmem:[#allocation6 + $0x40] sm:$0xff]
        %v578 = vld [vmem:[#allocation6 + $0x48] sm:$0xff]
        %v579 = vld [vmem:[#allocation6 + $0x50] sm:$0xff]
        %v580 = vld [vmem:[#allocation6 + $0x58] sm:$0xff]
        %v581 = vld [vmem:[#allocation6 + $0x60] sm:$0xff]
        %v582 = vld [vmem:[#allocation6 + $0x68] sm:$0xff]
        %v583 = vld [vmem:[#allocation6 + $0x70] sm:$0xff]
        %v584 = vld [vmem:[#allocation6 + $0x78] sm:$0xff]
        %v585 = vld [vmem:[%s5] sm:$0x1]
        %v587 = vlaneseq
        %v588 = vshrl.u32 %v587, 7
        %v589 = vsub.s32 0, %v588
        %v590 = vrot.slane %v585, %v589
        %592 = vmatprep.subr.mxu0 0.0
        %593 = vmatpush1.msra.mxu0 %v569
        %594 = vmatprep.subr.mxu0 0.0
        %595 = vmatpush1.msra.mxu0 %v570
        %596 = vmatprep.subr.mxu0 0.0
        %597 = vmatpush1.msra.mxu0 %v571
        %598 = vmatprep.subr.mxu0 0.0
        %599 = vmatpush1.msra.mxu0 %v572
        %600 = vmatprep.subr.mxu0 0.0
        %601 = vmatpush1.msra.mxu0 %v573
        %602 = vmatprep.subr.mxu0 0.0
        %603 = vmatpush1.msra.mxu0 %v574
        %604 = vmatprep.subr.mxu0 0.0
        %605 = vmatpush1.msra.mxu0 %v575
        %606 = vmatprep.subr.mxu0 0.0
        %607 = vmatpush1.msra.mxu0 %v576
        %608 = vmatprep.subr.mxu0 0.0
        %609 = vmatpush1.msra.mxu0 %v577
        %610 = vmatprep.subr.mxu0 0.0
        %611 = vmatpush1.msra.mxu0 %v578
        %612 = vmatprep.subr.mxu0 0.0
        %613 = vmatpush1.msra.mxu0 %v579
        %614 = vmatprep.subr.mxu0 0.0
        %615 = vmatpush1.msra.mxu0 %v580
        %616 = vmatprep.subr.mxu0 0.0
        %617 = vmatpush1.msra.mxu0 %v581
        %618 = vmatprep.subr.mxu0 0.0
        %619 = vmatpush1.msra.mxu0 %v582
        %620 = vmatprep.subr.mxu0 0.0
        %621 = vmatpush1.msra.mxu0 %v583
        %622 = vmatprep.subr.mxu0 0.0
        %623 = vmatpush1.msra.mxu0 %v584
        %624 = vmatprep.subr.mxu0 0.0
        %625 = vmatpush1.msra.mxu0 0.0
        %626 = vmatprep.subr.mxu0 0.0
        %627 = vmatpush1.msra.mxu0 0.0
        %628 = vmatprep.subr.mxu0 0.0
        %629 = vmatpush1.msra.mxu0 0.0
        %630 = vmatprep.subr.mxu0 0.0
        %631 = vmatpush1.msra.mxu0 0.0
        %632 = vmatprep.subr.mxu0 0.0
        %633 = vmatpush1.msra.mxu0 0.0
        %634 = vmatprep.subr.mxu0 0.0
        %635 = vmatpush1.msra.mxu0 0.0
        %636 = vmatprep.subr.mxu0 0.0
        %637 = vmatpush1.msra.mxu0 0.0
        %638 = vmatprep.subr.mxu0 0.0
        %639 = vmatpush1.msra.mxu0 0.0
        %640 = vmatprep.subr.mxu0 0.0
        %641 = vmatpush1.msra.mxu0 0.0
        %642 = vmatprep.subr.mxu0 0.0
        %643 = vmatpush1.msra.mxu0 0.0
        %644 = vmatprep.subr.mxu0 0.0
        %645 = vmatpush1.msra.mxu0 0.0
        %646 = vmatprep.subr.mxu0 0.0
        %647 = vmatpush1.msra.mxu0 0.0
        %648 = vmatprep.subr.mxu0 0.0
        %649 = vmatpush1.msra.mxu0 0.0
        %650 = vmatprep.subr.mxu0 0.0
        %651 = vmatpush1.msra.mxu0 0.0
        %652 = vmatprep.subr.mxu0 0.0
        %653 = vmatpush1.msra.mxu0 0.0
        %654 = vmatprep.subr.mxu0 0.0
        %655 = vmatpush1.msra.mxu0 0.0
        %656 = vmatprep.mubr.f32.mxu0 0.0
        %657 = vmatmul.mubr.f32.gmra.mrb[0].mxu0 %v568
        %v658 = vpop.f32.mrb[0].mxu0
        %v659 = vadd.f32 %v590, %v658
        %v660 = vpop.f32.mrb[0].mxu0
        %661 = vdwg.mxu0
        %vm662 = vcmp.lt.s32.totalorder %v331, 16
        %663 = vmax.xlane.f32.xlu0 %v659
        %v664 = vpop.xlane.xlu0 %663
        %v665 = vsub.f32 %v659, %v664
        %v666 = vmul.f32 %v665, 1.442695
        %v667 = vpow.pop %v666
        %v668 = vsel %vm662, %v667, 0.0
        %669 = vadd.xlane.f32.xlu0 %v668
        %v670 = vpop.xlane.xlu0 %669
        %v671 = vrcp.pop %v670
        %v672 = vsub.s32 127, %v331
        %v673 = vsel %vm662, %v667, -1.0
        %v675 = vand.u32 %v673, 4294967168
        %v676 = vor.u32 %v675, %v672
        %v677 = vand.u32 %v676, 65535
        %v678 = vshra.s32 %v676, 16
        %v679 = vcvt.s32.f32 %v677
        %v680 = vcvt.s32.f32 %v678
        %681 = vmax.xlane.f32.xlu0 %v680
        %v682 = vpop.xlane.xlu0 %681
        %vm683 = vcmp.eq.f32.partialorder %v680, %v682
        %v684 = vsel %vm683, %v679, -inf
        %685 = vmax.xlane.f32.xlu0 %v684
        %v686 = vpop.xlane.xlu0 %685
        %v687 = vcvt.f32.s32 %v686
        %v688 = vcvt.f32.s32 %v682
        %v689 = vshll.u32 %v688, 16
        %v690 = vadd.s32 %v689, %v687
        %v691 = vand.u32 %v690, 127
        %v692 = vsub.s32 127, %v691
        %vm693 = vcmp.eq.s32.totalorder %v331, %v692
        %vm694 = vcmask 7168
        %695 = vst.msk [vmem:[%s328] sm:$0xff] %vm694, %v692
        %v696 = vsel %vm693, -1.0, %v673
        %v698 = vand.u32 %v696, 4294967168
        %v699 = vor.u32 %v698, %v672
        %v700 = vand.u32 %v699, 65535
        %v701 = vshra.s32 %v699, 16
        %v702 = vcvt.s32.f32 %v700
        %v703 = vcvt.s32.f32 %v701
        %704 = vmax.xlane.f32.xlu0 %v703
        %v705 = vpop.xlane.xlu0 %704
        %vm706 = vcmp.eq.f32.partialorder %v703, %v705
        %v707 = vsel %vm706, %v702, -inf
        %708 = vmax.xlane.f32.xlu0 %v707
        %v709 = vpop.xlane.xlu0 %708
        %v710 = vcvt.f32.s32 %v709
        %v711 = vcvt.f32.s32 %v705
        %v712 = vshll.u32 %v711, 16
        %v713 = vadd.s32 %v712, %v710
        %v714 = vand.u32 %v713, 127
        %v715 = vsub.s32 127, %v714
        %vm716 = vcmp.eq.s32.totalorder %v331, %v715
        %vm717 = vcmask 15368
        %718 = vst.msk [vmem:[%s328] sm:$0xff] %vm717, %v715
        %v719 = vsel %vm716, -1.0, %v696
        %v721 = vand.u32 %v719, 4294967168
        %v722 = vor.u32 %v721, %v672
        %v723 = vand.u32 %v722, 65535
        %v724 = vshra.s32 %v722, 16
        %v725 = vcvt.s32.f32 %v723
        %v726 = vcvt.s32.f32 %v724
        %727 = vmax.xlane.f32.xlu0 %v726
        %v728 = vpop.xlane.xlu0 %727
        %vm729 = vcmp.eq.f32.partialorder %v726, %v728
        %v730 = vsel %vm729, %v725, -inf
        %731 = vmax.xlane.f32.xlu0 %v730
        %v732 = vpop.xlane.xlu0 %731
        %v733 = vcvt.f32.s32 %v732
        %v734 = vcvt.f32.s32 %v728
        %v735 = vshll.u32 %v734, 16
        %v736 = vadd.s32 %v735, %v733
        %v737 = vand.u32 %v736, 127
        %v738 = vsub.s32 127, %v737
        %vm739 = vcmp.eq.s32.totalorder %v331, %v738
        %vm740 = vcmask 23568
        %741 = vst.msk [vmem:[%s328] sm:$0xff] %vm740, %v738
        %v742 = vsel %vm693, %v668, 0.0
        %743 = vadd.xlane.f32.xlu0 %v742
        %v744 = vpop.xlane.xlu0 %743
        %v745 = vmul.f32 %v744, %v671
        %746 = vst.msk [vmem:[%s324] sm:$0xff] %vm694, %v745
        %v747 = vsel %vm716, %v668, 0.0
        %748 = vadd.xlane.f32.xlu0 %v747
        %v749 = vpop.xlane.xlu0 %748
        %v750 = vmul.f32 %v749, %v671
        %751 = vst.msk [vmem:[%s324] sm:$0xff] %vm717, %v750
        %v752 = vsel %vm739, %v668, 0.0
        %753 = vadd.xlane.f32.xlu0 %v752
        %v754 = vpop.xlane.xlu0 %753
        %v755 = vmul.f32 %v754, %v671
        %756 = vst.msk [vmem:[%s324] sm:$0xff] %vm740, %v755
        %p757 = scmp.lt.s32.totalorder %s21, 1
        %s758 = scalar_select %p757, %s21, 1
        %s759 = smul.addr %s758, 8
        %s760 = scalar_lea.vmem %s6, %s759
        %p761 = scmp.lt.s32.totalorder %s21, 1
        %s762 = scalar_select %p761, %s21, 1
        %s763 = smul.addr %s762, 8
        %s764 = scalar_lea.vmem %s7, %s763
        // Predicated region
        $region57: #{tpu_custom_call.1} parent=43 // pred_check
          %p765 = pneg %p170
        $region58: #{tpu_custom_call.1} parent=43 // pred_check_branch
          %767 = sbr.rel (%p765) target = $region60
        $region59: #{tpu_custom_call.1} parent=43 // pred_region
          _
        $region60: #{tpu_custom_call.1} parent=43 // pred_fallthru
          _
        // Predicated region
        $region61: #{tpu_custom_call.1} parent=43 // pred_check
          %p768 = pneg %p196
        $region62: #{tpu_custom_call.1} parent=43 // pred_check_branch
          %770 = sbr.rel (%p768) target = $region64
        $region63: #{tpu_custom_call.1} parent=43 // pred_region
          _
        $region64: #{tpu_custom_call.1} parent=43 // pred_fallthru
          _
      $region44: #{tpu_custom_call.1} parent=5 // pred_fallthru
        _
      %p771 = scmp.le.s32.totalorder 2, %s16
      // Predicated region
      $region65: #{tpu_custom_call.1} parent=5 // pred_check
        %p772 = pneg %p771
      $region66: #{tpu_custom_call.1} parent=5 // pred_check_branch
        %774 = sbr.rel (%p772) target = $region68
      $region67: #{tpu_custom_call.1} parent=5 // pred_region
        %s775 = ssub.s32 %s16, 2
        // Predicated region
        $region69: #{tpu_custom_call.1} parent=67 // pred_check
          %p776 = pneg %p176
        $region70: #{tpu_custom_call.1} parent=67 // pred_check_branch
          %778 = sbr.rel (%p776) target = $region72
        $region71: #{tpu_custom_call.1} parent=67 // pred_region
          %p779 = scmp.lt.s32.totalorder %s22, 1
          %s780 = scalar_select %p779, %s22, 1
          %s781 = smul.addr %s780, 8
          %s782 = scalar_lea.vmem %s6, %s781
        $region72: #{tpu_custom_call.1} parent=67 // pred_fallthru
          _
        // Predicated region
        $region73: #{tpu_custom_call.1} parent=67 // pred_check
          %p783 = pneg %p202
        $region74: #{tpu_custom_call.1} parent=67 // pred_check_branch
          %785 = sbr.rel (%p783) target = $region76
        $region75: #{tpu_custom_call.1} parent=67 // pred_region
          %p786 = scmp.lt.s32.totalorder %s22, 1
          %s787 = scalar_select %p786, %s22, 1
          %s788 = smul.addr %s787, 8
          %s789 = scalar_lea.vmem %s7, %s788
        $region76: #{tpu_custom_call.1} parent=67 // pred_fallthru
          _
      $region68: #{tpu_custom_call.1} parent=5 // pred_fallthru
        _
    $region6: #{tpu_custom_call.1} parent=1 // loop_footer
      %s20 = sadd.s32 1, %s16
    $region7: #{tpu_custom_call.1} parent=1 // loop_footer_branch
      %15 = sbr.rel target = $region3
    $region8: #{tpu_custom_call.1} parent=1 // loop_exit
      _
    %790 = vsyncpa [#allocation3], 1
    %s791 = scalar_lea.sflag [#allocation3], 1
    %792 = vsyncpa %s791, 1
    %793 = vsyncpa [#allocation5], 1

</llo_original>
